<compile_context>
chip_gen: v5e
topology: v5e:2x2
jax: 0.10.0
libtpu: 0.0.40
codegen_flags: <defaults>
</compile_context>

<pallas_src>
from functools import partial

import jax
import jax.numpy as jnp
from jax.experimental import pallas as pl
from jax.experimental.pallas import tpu as pltpu


def _round_up(a, b):
    return -(-a // b) * b


def _fused_kernel(x_ref, w_ref, b_ref, o_ref):
    # One MXU pass per tile: (Tr, P*Fp) @ (P*Fp, P*H) + (1, P*H).
    acc = jnp.dot(x_ref[...], w_ref[...], preferred_element_type=jnp.float32)
    o_ref[...] = (acc + b_ref[...]).astype(o_ref.dtype)


def _knn_sorted_features(x, nb_neighbors):
    """kNN selection, gather, sort-by-x / sort-by-y, im2col flatten (JAX glue)."""
    B, N, D = x.shape
    K = nb_neighbors + 1
    # Matmul-form pairwise squared distances (same ordering as torch.cdist p=2).
    x2 = jnp.sum(x * x, axis=-1)                               # (B, N)
    gram = jnp.einsum("bnd,bmd->bnm", x, x)                    # runs on the MXU
    d2 = x2[:, :, None] + x2[:, None, :] - 2.0 * gram          # (B, N, N)
    # TODO(synk): torch.topk tie-breaking on exactly-equal distances is not reproduced.
    _, knn_idx = jax.lax.top_k(-d2, K)                         # (B, N, K) nearest (incl. self)
    knn = x[jnp.arange(B)[:, None, None], knn_idx]             # (B, N, K, 2)
    ord_x = jnp.argsort(knn[..., 0], axis=-1)
    ord_y = jnp.argsort(knn[..., 1], axis=-1)
    sx = jnp.take_along_axis(knn, ord_x[..., None], axis=2)    # (B, N, K, 2)
    sy = jnp.take_along_axis(knn, ord_y[..., None], axis=2)
    # im2col for Conv1d with output length 1: feature index = channel*K + position.
    fx = jnp.transpose(sx, (0, 1, 3, 2)).reshape(B * N, D * K)
    fy = jnp.transpose(sy, (0, 1, 3, 2)).reshape(B * N, D * K)
    return fx, fy


@partial(jax.jit,
         static_argnames=("nb_neighbors", "kernel_size", "max_tile_rows", "use_bf16"))
def conv_embedding_xy(x, params, nb_neighbors, kernel_size,
                      max_tile_rows=512, use_bf16=False):
    B, N, D = x.shape
    K = nb_neighbors + 1
    # The PyTorch module's only legal configuration (conv output length == 1,
    # required for the final broadcast add onto node_embedding).
    assert kernel_size == K
    H = params["w1"].shape[0]

    # ---- data-dependent glue in plain JAX ----
    fx, fy = _knn_sorted_features(x, nb_neighbors)
    xf = x.reshape(B * N, D)
    feats = jnp.concatenate([xf, fx, fy], axis=1)              # (M, F) single slab
    M, F = feats.shape

    # ---- fold W2 into conv weights; combine all biases (exact algebra) ----
    w1t = params["w1"].T                                       # (D, H)
    w2t = params["w2"].T                                       # (H, H)
    wxt = params["wx"].reshape(H, D * K).T @ w2t               # (DK, H)
    wyt = params["wy"].reshape(H, D * K).T @ w2t               # (DK, H)
    w_fused = jnp.concatenate([w1t, wxt, wyt], axis=0)         # (F, H)
    b_fused = (params["b1"] + params["b2"]
               + (params["bx"] + params["by"]) @ w2t)          # (H,)

    # ---- lane-dense packing: P row groups share one 128-lane output row ----
    P = 128 // H if (H < 128 and 128 % H == 0) else 1
    Fp = _round_up(F, 128 // P)                                # per-group feature pad
    Wout = P * H                                               # 128 for H=32

    w_pad = jnp.zeros((Fp, H), w_fused.dtype).at[:F, :].set(w_fused)
    w_block = jax.scipy.linalg.block_diag(*([w_pad] * P))      # (P*Fp, P*H)
    b_block = jnp.tile(b_fused, P).reshape(1, Wout)

    R = pl.cdiv(M, P)                                          # packed rows
    n_tiles = pl.cdiv(R, max_tile_rows)
    Tr = _round_up(pl.cdiv(R, n_tiles), 8)                     # balanced, sublane aligned
    R_pad = _round_up(R, Tr)
    M_pad = R_pad * P

    feats_p = jnp.zeros((M_pad, Fp), feats.dtype).at[:M, :F].set(feats)
    feats_p = feats_p.reshape(R_pad, P * Fp)                   # free: row-major memory unchanged

    if use_bf16:
        # bf16 matmul inputs (full-rate MXU on v6e/v7x, half the DMA bytes);
        # accumulation and bias add stay in f32.
        feats_p = feats_p.astype(jnp.bfloat16)
        w_block = w_block.astype(jnp.bfloat16)

    out = pl.pallas_call(
        _fused_kernel,
        out_shape=jax.ShapeDtypeStruct((R_pad, Wout), x.dtype),
        grid=(R_pad // Tr,),
        in_specs=[
            pl.BlockSpec((Tr, P * Fp), lambda i: (i, 0)),      # activation slab
            pl.BlockSpec((P * Fp, Wout), lambda i: (0, 0)),    # grid-invariant weight
            pl.BlockSpec((1, Wout), lambda i: (0, 0)),         # grid-invariant bias
        ],
        out_specs=pl.BlockSpec((Tr, Wout), lambda i: (i, 0)),
        compiler_params=pltpu.CompilerParams(
            dimension_semantics=("parallel",)),
    )(feats_p, w_block, b_block)

    out = out.reshape(M_pad, H)[:M]                            # free: row-major memory unchanged
    return out.reshape(B, N, H)


def reference_forward(x, params, nb_neighbors):
    """Pure-JAX reference mirroring the PyTorch forward (no fusion)."""
    B, N, _ = x.shape
    K = nb_neighbors + 1
    node = x @ params["w1"].T + params["b1"]
    d2 = jnp.sum((x[:, :, None, :] - x[:, None, :, :]) ** 2, axis=-1)
    knn_idx = jnp.argsort(d2, axis=-1)[:, :, :K]
    knn = x[jnp.arange(B)[:, None, None], knn_idx]
    sx = jnp.take_along_axis(knn, jnp.argsort(knn[..., 0], -1)[..., None], axis=2)
    sy = jnp.take_along_axis(knn, jnp.argsort(knn[..., 1], -1)[..., None], axis=2)
    cx = jnp.einsum("bnkc,hck->bnh", sx, params["wx"]) + params["bx"]
    cy = jnp.einsum("bnkc,hck->bnh", sy, params["wy"]) + params["by"]
    conv = (cx + cy) @ params["w2"].T + params["b2"]
    return node + conv


def init_params(key, nb_neighbors, kernel_size, dim_emb, dim_in):
    ks = jax.random.split(key, 8)

    def u(k, shape, fan_in):
        b = 1.0 / float(fan_in) ** 0.5
        return jax.random.uniform(k, shape, jnp.float32, -b, b)

    H = dim_emb
    fan_conv = dim_in * kernel_size
    return {
        "wx": u(ks[0], (H, dim_in, kernel_size), fan_conv),
        "bx": u(ks[1], (H,), fan_conv),
        "wy": u(ks[2], (H, dim_in, kernel_size), fan_conv),
        "by": u(ks[3], (H,), fan_conv),
        "w1": u(ks[4], (H, dim_in), dim_in),
        "b1": u(ks[5], (H,), dim_in),
        "w2": u(ks[6], (H, H), H),
        "b2": u(ks[7], (H,), H),
    }


if __name__ == "__main__":
    B, N = 2, 16
    nb_neighbors = 7
    kernel_size = nb_neighbors + 1   # conv output length 1, as the module requires
    dim_emb = 32
    dim_input_nodes = 2

    key = jax.random.PRNGKey(0)
    kx, kp = jax.random.split(key)
    x = jax.random.uniform(kx, (B, N, dim_input_nodes), jnp.float32)
    params = init_params(kp, nb_neighbors, kernel_size, dim_emb, dim_input_nodes)

    ref = reference_forward(x, params, nb_neighbors)

    # f32 path (default; v5e-safe).
    out = conv_embedding_xy(x, params, nb_neighbors, kernel_size)
    out = jax.block_until_ready(out)
    assert out.shape == (B, N, dim_emb)
    assert jnp.allclose(out, ref, atol=1e-4, rtol=1e-4), \
        float(jnp.max(jnp.abs(out - ref)))

    # bf16 matmul-input path (v6e/v7x MXU rate, half the DMA bytes); looser tolerance.
    out_bf16 = conv_embedding_xy(x, params, nb_neighbors, kernel_size, use_bf16=True)
    out_bf16 = jax.block_until_ready(out_bf16)
    assert jnp.allclose(out_bf16, ref, atol=1e-1, rtol=1e-1)

    print("KERNEL_OK")
</pallas_src>

<mosaic_0001>
module attributes {stable_mosaic.version = 11 : i64} {
  func.func @_fused_kernel(%arg0: i32, %arg1: memref<8x256xf32, #tpu.memory_space<vmem>>, %arg2: memref<256x128xf32, #tpu.memory_space<vmem>>, %arg3: memref<1x128xf32, #tpu.memory_space<vmem>>, %arg4: memref<8x128xf32, #tpu.memory_space<vmem>>) attributes {dimension_semantics = [#tpu.dimension_semantics<parallel>], iteration_bounds = array<i64: 1>, scalar_prefetch = 0 : i64, scratch_operands = 0 : i64, tpu.core_type = #tpu.core_type<tc>, window_params = [{transform_indices = @transform_0, window_bounds = array<i64: 8, 256>}, {pipeline_mode = #tpu.pipeline_mode<synchronous>, transform_indices = @transform_1, window_bounds = array<i64: 256, 128>}, {pipeline_mode = #tpu.pipeline_mode<synchronous>, transform_indices = @transform_2, window_bounds = array<i64: 1, 128>}, {transform_indices = @transform_3, window_bounds = array<i64: 8, 128>}]} {
    %c0 = arith.constant 0 : index
    %c0_0 = arith.constant 0 : index
    %0 = vector.load %arg1[%c0, %c0_0] : memref<8x256xf32, #tpu.memory_space<vmem>>, vector<8x256xf32>
    %c0_1 = arith.constant 0 : index
    %c0_2 = arith.constant 0 : index
    %1 = vector.load %arg2[%c0_1, %c0_2] : memref<256x128xf32, #tpu.memory_space<vmem>>, vector<256x128xf32>
    %cst = arith.constant dense<0.000000e+00> : vector<8x128xf32>
    %2 = tpu.matmul %0, %1, %cst {dimension_numbers = #tpu.dot_dimension_numbers<[1], [0], [0], [1], [0, 0, 1, 1], [], []>} : vector<8x256xf32>, vector<256x128xf32>, vector<8x128xf32> -> vector<8x128xf32>
    %c0_3 = arith.constant 0 : index
    %c0_4 = arith.constant 0 : index
    %3 = vector.load %arg3[%c0_3, %c0_4] : memref<1x128xf32, #tpu.memory_space<vmem>>, vector<1x128xf32>
    %4 = vector.broadcast %3 : vector<1x128xf32> to vector<8x128xf32>
    %5 = arith.addf %2, %4 : vector<8x128xf32>
    %c0_5 = arith.constant 0 : index
    %c0_6 = arith.constant 0 : index
    %6 = vector.load %arg4[%c0_5, %c0_6] : memref<8x128xf32, #tpu.memory_space<vmem>>, vector<8x128xf32>
    tpu.vector_store %arg4[%c0_5, %c0_6], %5 {strides = array<i32>} : memref<8x128xf32, #tpu.memory_space<vmem>>, vector<8x128xf32>,
    return
  }
  func.func @transform_0(%arg0: i32) -> (i32, i32) {
    %c0_i32 = arith.constant 0 : i32
    %c0_i32_0 = arith.constant 0 : i32
    return %arg0, %c0_i32 : i32, i32
  }
  func.func @transform_1(%arg0: i32) -> (i32, i32) {
    %c0_i32 = arith.constant 0 : i32
    %c0_i32_0 = arith.constant 0 : i32
    %c0_i32_1 = arith.constant 0 : i32
    return %c0_i32, %c0_i32_0 : i32, i32
  }
  func.func @transform_2(%arg0: i32) -> (i32, i32) {
    %c0_i32 = arith.constant 0 : i32
    %c0_i32_0 = arith.constant 0 : i32
    %c0_i32_1 = arith.constant 0 : i32
    return %c0_i32, %c0_i32_0 : i32, i32
  }
  func.func @transform_3(%arg0: i32) -> (i32, i32) {
    %c0_i32 = arith.constant 0 : i32
    %c0_i32_0 = arith.constant 0 : i32
    return %arg0, %c0_i32 : i32, i32
  }
}

</mosaic_0001>

<llo_original>
// kernel: tile.8
$region0: #{tile.8}
  #allocation0 [shape = 's32[1]{0}', space=sflag, size = 0x4, scoped, tag = 'scoped memory for tile.8']
  %s0 = inlined_call_operand.vmem [shape: f32[32], index: 0, kind: input, shape index: {}]
  %s1 = inlined_call_operand.vmem [shape: f32[4,32], index: 1, kind: output, shape index: {}]
  // Predicated region
  $region2: #{tile.8} parent=0 // pred_check
    _
  $region3: #{tile.8} parent=0 // pred_check_branch
    %3 = sbr.rel (0) target = $region5
  $region4: #{tile.8} parent=0 // pred_region
    _
  $region5: #{tile.8} parent=0 // pred_fallthru
    _
  %v4 = vld [vmem:[%s0] ss:$0 sm:$0xff]
  %5 = vst [vmem:[%s1] sm:$0xf] %v4

// kernel: tile.9
$region0: #{tile.9}
  %s0 = inlined_call_operand.vmem [shape: f32[4,32], index: 0, kind: input, shape index: {}]
  %s1 = inlined_call_operand.vmem [shape: f32[1,128], index: 1, kind: output, shape index: {}]
  $region1: #{tile.9} parent=0
    #allocation0 [shape = 'u8[4096]{0}', space=vmem, size = 0x1000, scoped, tag = 'scoped mem for output reshape']
    #allocation1 [shape = 'u8[4096]{0}', space=vmem, size = 0x1000, scoped, tag = 'scoped mem for input reshape']
    %s3 = ssub.s32 16, 1
    %v4 = vld [vmem:[%s0] sm:%s3]
    %5 = vst [vmem:[#allocation1] sm:%s3] %v4
    %v6 = vld [vmem:[#allocation1] sm:$0x1]
    %vm7 = vcmask 261120
    %8 = vst.msk [vmem:[#allocation0] sm:$0x1] %vm7, %v6
    %s9 = scalar_lea.vmem [#allocation1], 3
    %v10 = vld [vmem:[%s9] sm:$0x1]
    %11 = vrot.lane.b32.xlu0 %v10, 96
    %v12 = vpop.permute.xlu0 %11
    %vm13 = vcmask 1048320
    %14 = vst.msk [vmem:[#allocation0] sm:$0x1] %vm13, %v12
    %s15 = scalar_lea.vmem [#allocation1], 2
    %v16 = vld [vmem:[%s15] sm:$0x1]
    %17 = vrot.lane.b32.xlu0 %v16, 64
    %v18 = vpop.permute.xlu0 %17
    %vm19 = vcmask 785920
    %20 = vst.msk [vmem:[#allocation0] sm:$0x1] %vm19, %v18
    %s21 = scalar_lea.vmem [#allocation1], 1
    %v22 = vld [vmem:[%s21] sm:$0x1]
    %23 = vrot.lane.b32.xlu0 %v22, 32
    %v24 = vpop.permute.xlu0 %23
    %vm25 = vcmask 523520
    %26 = vst.msk [vmem:[#allocation0] sm:$0x1] %vm25, %v24
    %s28 = ssub.s32 2, 1
    %v29 = vld [vmem:[#allocation0] sm:%s28]
    %s31 = ssub.s32 2, 1
    %32 = vst [vmem:[%s1] sm:%s31] %v29

// kernel: conv_embedding_xy.1
$region0: #{conv_embedding_xy.1}
  #allocation0 [shape = 'u32[]', space=smem, size = 0x4, offset = 0x4, fixed_abs, tag = 'smem constant byte address 0x4 - core index']
  #allocation1 [shape = 'u32[72,128]{1,0:T(1,128)}', space=vmem, size = 0x9000, scoped, tag = 'internal scratch']
  %s0 = inlined_call_operand.vmem [shape: f32[8,256], index: 0, kind: input, shape index: {}]
  %s1 = inlined_call_operand.vmem [shape: f32[256,128], index: 1, kind: input, shape index: {}]
  %s2 = inlined_call_operand.vmem [shape: f32[1,128], index: 2, kind: input, shape index: {}]
  %s3 = inlined_call_operand.vmem [shape: f32[8,128], index: 3, kind: output, shape index: {}]
  %s4 = sld [smem:[#allocation0]]
  $region22: #{conv_embedding_xy.1} parent=0
    _
  %s6 = ssub.s32 1, %s4
  %s7 = scalar_select 0, %s6, %s4
  // Predicated region
  $region2: #{conv_embedding_xy.1} parent=0 // pred_check
    _
  $region3: #{conv_embedding_xy.1} parent=0 // pred_check_branch
    %9 = sbr.rel (0) target = $region5
  $region4: #{conv_embedding_xy.1} parent=0 // pred_region
    _
  $region5: #{conv_embedding_xy.1} parent=0 // pred_fallthru
    _
  // Predicated region
  $region6: #{conv_embedding_xy.1} parent=0 // pred_check
    _
  $region7: #{conv_embedding_xy.1} parent=0 // pred_check_branch
    %11 = sbr.rel (0) target = $region9
  $region8: #{conv_embedding_xy.1} parent=0 // pred_region
    _
  $region9: #{conv_embedding_xy.1} parent=0 // pred_fallthru
    _
  // Predicated region
  $region10: #{conv_embedding_xy.1} parent=0 // pred_check
    _
  $region11: #{conv_embedding_xy.1} parent=0 // pred_check_branch
    %13 = sbr.rel (0) target = $region13
  $region12: #{conv_embedding_xy.1} parent=0 // pred_region
    _
  $region13: #{conv_embedding_xy.1} parent=0 // pred_fallthru
    _
  %v14 = vld [vmem:[%s0] sm:$0xff]
  %v15 = vld [vmem:[%s0 + $0x8] sm:$0xff]
  %v16 = vld [vmem:[%s1] sm:$0xff]
  %v17 = vld [vmem:[%s1 + $0x8] sm:$0xff]
  %v18 = vld [vmem:[%s1 + $0x10] sm:$0xff]
  %v19 = vld [vmem:[%s1 + $0x18] sm:$0xff]
  %v20 = vld [vmem:[%s1 + $0x20] sm:$0xff]
  %v21 = vld [vmem:[%s1 + $0x28] sm:$0xff]
  %v22 = vld [vmem:[%s1 + $0x30] sm:$0xff]
  %v23 = vld [vmem:[%s1 + $0x38] sm:$0xff]
  %v24 = vld [vmem:[%s1 + $0x40] sm:$0xff]
  %v25 = vld [vmem:[%s1 + $0x48] sm:$0xff]
  %v26 = vld [vmem:[%s1 + $0x50] sm:$0xff]
  %v27 = vld [vmem:[%s1 + $0x58] sm:$0xff]
  %v28 = vld [vmem:[%s1 + $0x60] sm:$0xff]
  %v29 = vld [vmem:[%s1 + $0x68] sm:$0xff]
  %v30 = vld [vmem:[%s1 + $0x70] sm:$0xff]
  %v31 = vld [vmem:[%s1 + $0x78] sm:$0xff]
  %v32 = vld [vmem:[%s1 + $0x80] sm:$0xff]
  %v33 = vld [vmem:[%s1 + $0x88] sm:$0xff]
  %v34 = vld [vmem:[%s1 + $0x90] sm:$0xff]
  %v35 = vld [vmem:[%s1 + $0x98] sm:$0xff]
  %v36 = vld [vmem:[%s1 + $0xa0] sm:$0xff]
  %v37 = vld [vmem:[%s1 + $0xa8] sm:$0xff]
  %v38 = vld [vmem:[%s1 + $0xb0] sm:$0xff]
  %v39 = vld [vmem:[%s1 + $0xb8] sm:$0xff]
  %v40 = vld [vmem:[%s1 + $0xc0] sm:$0xff]
  %v41 = vld [vmem:[%s1 + $0xc8] sm:$0xff]
  %v42 = vld [vmem:[%s1 + $0xd0] sm:$0xff]
  %v43 = vld [vmem:[%s1 + $0xd8] sm:$0xff]
  %v44 = vld [vmem:[%s1 + $0xe0] sm:$0xff]
  %v45 = vld [vmem:[%s1 + $0xe8] sm:$0xff]
  %v46 = vld [vmem:[%s1 + $0xf0] sm:$0xff]
  %v47 = vld [vmem:[%s1 + $0xf8] sm:$0xff]
  %v48 = vld [vmem:[%s2] sm:$0x1]
  %v50 = vperm.slane %v48, 0
  %52 = vmatpush.msra.mxu0 %v31
  %53 = vmatpush.msra.mxu0 %v30
  %54 = vmatpush.msra.mxu0 %v29
  %55 = vmatpush.msra.mxu0 %v28
  %56 = vmatpush.msra.mxu0 %v27
  %57 = vmatpush.msra.mxu0 %v26
  %58 = vmatpush.msra.mxu0 %v25
  %59 = vmatpush.msra.mxu0 %v24
  %60 = vmatpush.msra.mxu0 %v23
  %61 = vmatpush.msra.mxu0 %v22
  %62 = vmatpush.msra.mxu0 %v21
  %63 = vmatpush.msra.mxu0 %v20
  %64 = vmatpush.msra.mxu0 %v19
  %65 = vmatpush.msra.mxu0 %v18
  %66 = vmatpush.msra.mxu0 %v17
  %67 = vmatpush.msra.mxu0 %v16
  %68 = vmatmul.f32.gmra.mxu0 %v14
  %v69 = vpop.f32.mrf.mxu0
  %v70 = vadd.f32 %v50, %v69
  %71 = vdwg.mxu0
  %72 = vmatpush.msra.mxu0 %v47
  %73 = vmatpush.msra.mxu0 %v46
  %74 = vmatpush.msra.mxu0 %v45
  %75 = vmatpush.msra.mxu0 %v44
  %76 = vmatpush.msra.mxu0 %v43
  %77 = vmatpush.msra.mxu0 %v42
  %78 = vmatpush.msra.mxu0 %v41
  %79 = vmatpush.msra.mxu0 %v40
  %80 = vmatpush.msra.mxu0 %v39
  %81 = vmatpush.msra.mxu0 %v38
  %82 = vmatpush.msra.mxu0 %v37
  %83 = vmatpush.msra.mxu0 %v36
  %84 = vmatpush.msra.mxu0 %v35
  %85 = vmatpush.msra.mxu0 %v34
  %86 = vmatpush.msra.mxu0 %v33
  %87 = vmatpush.msra.mxu0 %v32
  %88 = vmatmul.f32.gmra.mxu0 %v15
  %v89 = vpop.f32.mrf.mxu0
  %v90 = vadd.f32 %v70, %v89
  %91 = vdwg.mxu0
  %92 = vst [vmem:[%s3] sm:$0xff] %v90
  // Predicated region
  $region14: #{conv_embedding_xy.1} parent=0 // pred_check
    _
  $region15: #{conv_embedding_xy.1} parent=0 // pred_check_branch
    %94 = sbr.rel (0) target = $region17
  $region16: #{conv_embedding_xy.1} parent=0 // pred_region
    _
  $region17: #{conv_embedding_xy.1} parent=0 // pred_fallthru
    _
  // Predicated region
  $region18: #{conv_embedding_xy.1} parent=0 // pred_check
    _
  $region19: #{conv_embedding_xy.1} parent=0 // pred_check_branch
    %96 = sbr.rel (0) target = $region21
  $region20: #{conv_embedding_xy.1} parent=0 // pred_region
    _
  $region21: #{conv_embedding_xy.1} parent=0 // pred_fallthru
    _

</llo_original>
